<compile_context>
chip_gen: v5e
topology: v5e:2x2
jax: 0.10.0
libtpu: 0.0.40
codegen_flags: <defaults>
</compile_context>

<pallas_src>
import jax
import jax.numpy as jnp
from jax import lax
from jax.experimental import pallas as pl
from jax.experimental.pallas import tpu as pltpu

_SELU_SCALE = 1.0507009873554804934193349852946
_SELU_ALPHA = 1.6732632423543772848170429916717
_SELU_SCALE_ALPHA = _SELU_SCALE * _SELU_ALPHA

# "A @ B^T": contract lhs dim 1 with rhs dim 1 (flash-attention NT pattern).
_NT_DIMS = (((1,), (1,)), ((), ()))

# Batch sub-chunk processed fully in vregs per unrolled step inside the kernel.
_CHUNK = 512


def _selu(h):
    # Folded constants: where(h>0, s*h, s*a*exp(h) - s*a).  exp rides the EUP
    # slot; select/mul on the VPU.
    # TODO(synk): use expm1 for tighter small-negative precision vs torch's
    # expm1-based SELU once Mosaic lowering for it is guaranteed; exp-1 form is
    # well within the 1e-4 tolerance used here.
    return jnp.where(h > 0, _SELU_SCALE * h,
                     _SELU_SCALE_ALPHA * jnp.exp(h) - _SELU_SCALE_ALPHA)


def _round_up(x, m):
    return (x + m - 1) // m * m


def mlp_kernel(x_ref,
               w1_ref, b1_ref,
               w2_ref, b2_ref,
               w3_ref, b3_ref,
               w4_ref, b4_ref,
               o_ref):
    """x tile: (tb, 12) batch-major.  Everything downstream is feature-major
    (features x batch): the batch dim sits on the 128-lane axis, so SELU / bias
    adds and the (1, tb) output store are lane-dense vreg ops."""
    w1 = w1_ref[...]; b1 = b1_ref[...]
    w2 = w2_ref[...]; b2 = b2_ref[...]
    w3 = w3_ref[...]; b3 = b3_ref[...]
    w4 = w4_ref[...]; b4 = b4_ref[...]

    def chain(x_c):
        # h1 = W1 @ x_c^T via NT dot_general (no explicit transpose op needed).
        h1 = _selu(lax.dot_general(w1, x_c, _NT_DIMS,
                                   preferred_element_type=jnp.float32) + b1)
        h2 = _selu(jnp.dot(w2, h1, preferred_element_type=jnp.float32) + b2)
        h3 = _selu(jnp.dot(w3, h2, preferred_element_type=jnp.float32) + b3)
        return jnp.dot(w4, h3, preferred_element_type=jnp.float32) + b4

    tb = x_ref.shape[0]  # static block size
    if tb > _CHUNK and tb % _CHUNK == 0:
        # Statically unrolled chunk loop: offsets are compile-time constants, so
        # every slice is a static ref view.  Each chunk's h1/h2/h3 stay in vregs
        # instead of round-tripping (32, tb) f32 temporaries through VMEM.
        for c in range(tb // _CHUNK):
            off = c * _CHUNK
            x_c = x_ref[off:off + _CHUNK, :]                       # (CHUNK, 12)
            o_ref[:, off:off + _CHUNK] = chain(x_c).astype(o_ref.dtype)
    else:
        # Small / irregular tile: single pass over the whole block.
        o_ref[...] = chain(x_ref[...]).astype(o_ref.dtype)


def mlp_forward(x, params, *, tile_b=8192):
    """x: [B, 12] float32  ->  [B, 1] float32 (matches PyTorch Model.forward).

    tile_b: max batch rows per grid step.  At 8192 the lane-padded x
    double-buffer is ~8 MiB, well inside v7x's 64 MiB VMEM and v5e/v6e budgets;
    the vmem limit is raised so 16K/32K user tiles also fit on v6e.
    """
    (w1, b1), (w2, b2), (w3, b3), (w4, b4) = params
    B, F = x.shape

    if B <= 2 * _CHUNK:
        # Tiny batch: one full-array block (block shape == array shape, so no
        # (8,128) divisibility constraints, no padding, no masking).
        tb = B
    else:
        # >= 2 grid steps (v7x: both TensorCores get work on the "parallel"
        # batch axis) with an even-ish split; tb is a multiple of _CHUNK so the
        # in-kernel chunk loop is exact.  No jnp.pad: the last block may be
        # ragged — Pallas pads the OOB input reads (unspecified values) and
        # masks the OOB output writeback; batch columns are independent through
        # the whole chain, so pad columns never touch valid outputs.
        n_steps = pl.cdiv(B, tile_b)
        if n_steps % 2:
            n_steps += 1                      # even number of steps for 2 TCs
        tb = _round_up(pl.cdiv(B, n_steps), _CHUNK)

    grid = (pl.cdiv(B, tb),)

    def const_spec(arr):
        shape = arr.shape
        return pl.BlockSpec(shape, lambda i: (0,) * len(shape))

    # TODO(synk): if the upstream producer can emit x feature-major (12, B), the
    # x block becomes lane-dense (~10x less VMEM, dense DMA rows); do NOT add a
    # standalone transpose here — that would cost a full extra HBM pass.
    out = pl.pallas_call(
        mlp_kernel,
        out_shape=jax.ShapeDtypeStruct((1, B), jnp.float32),
        grid=grid,
        in_specs=[
            pl.BlockSpec((tb, F), lambda i: (i, 0)),        # streamed x tiles
            const_spec(w1), const_spec(b1),
            const_spec(w2), const_spec(b2),
            const_spec(w3), const_spec(b3),
            const_spec(w4), const_spec(b4),
        ],
        out_specs=pl.BlockSpec((1, tb), lambda i: (0, i)),  # lane-dense output
        compiler_params=pltpu.CompilerParams(
            dimension_semantics=("parallel",),
            vmem_limit_bytes=48 * 1024 * 1024),             # < v7x 64 MiB/TC
    )(x, w1, b1, w2, b2, w3, b3, w4, b4)

    # (1, B) -> (B, 1) is a pure reshape (degenerate transpose).
    return out.reshape(B, 1)


def init_params(key, layer_1, layer_2, layer_3):
    """PyTorch-Linear-style init (uniform +/- 1/sqrt(fan_in)), torch [out, in]
    layout.  Biases stored as (out, 1) columns so they broadcast over the lane
    (batch) axis inside the kernel."""
    dims = [(12, layer_1), (layer_1, layer_2), (layer_2, layer_3), (layer_3, 1)]
    params = []
    for fan_in, fan_out in dims:
        key, kw, kb = jax.random.split(key, 3)
        bound = 1.0 / (fan_in ** 0.5)
        w = jax.random.uniform(kw, (fan_out, fan_in), jnp.float32, -bound, bound)
        b = jax.random.uniform(kb, (fan_out, 1), jnp.float32, -bound, bound)
        params.append((w, b))
    return params


def reference_forward(x, params):
    (w1, b1), (w2, b2), (w3, b3), (w4, b4) = params
    h = jax.nn.selu(x @ w1.T + b1.T)
    h = jax.nn.selu(h @ w2.T + b2.T)
    h = jax.nn.selu(h @ w3.T + b3.T)
    return h @ w4.T + b4.T


if __name__ == "__main__":
    key = jax.random.PRNGKey(0)
    k_small, k_big, k_par = jax.random.split(key, 3)

    layer_1, layer_2, layer_3 = 32, 32, 16
    params = init_params(k_par, layer_1, layer_2, layer_3)

    # Small-shape test: single full-array block (whole-tile kernel path).
    batch = 8
    x_small = jax.random.normal(k_small, (batch, 12), dtype=jnp.float32)
    out_small = jax.block_until_ready(mlp_forward(x_small, params))
    ref_small = reference_forward(x_small, params)
    assert out_small.shape == (batch, 1)
    assert jnp.allclose(out_small, ref_small, atol=1e-4, rtol=1e-4), \
        "small-batch mismatch vs JAX reference"

    # Mid-size test: 2-step parallel grid, ragged last block (no padding pass),
    # statically-unrolled in-kernel chunk loop.
    big_batch = 4097
    x_big = jax.random.normal(k_big, (big_batch, 12), dtype=jnp.float32)
    out_big = jax.block_until_ready(mlp_forward(x_big, params))
    ref_big = reference_forward(x_big, params)
    assert out_big.shape == (big_batch, 1)
    assert jnp.allclose(out_big, ref_big, atol=1e-4, rtol=1e-4), \
        "large-batch mismatch vs JAX reference"

    print("KERNEL_OK")
</pallas_src>

<mosaic_0001>
module attributes {stable_mosaic.version = 11 : i64} {
  func.func @mlp_kernel(%arg0: i32, %arg1: memref<8x12xf32, #tpu.memory_space<vmem>>, %arg2: memref<32x12xf32, #tpu.memory_space<vmem>>, %arg3: memref<32x1xf32, #tpu.memory_space<vmem>>, %arg4: memref<32x32xf32, #tpu.memory_space<vmem>>, %arg5: memref<32x1xf32, #tpu.memory_space<vmem>>, %arg6: memref<16x32xf32, #tpu.memory_space<vmem>>, %arg7: memref<16x1xf32, #tpu.memory_space<vmem>>, %arg8: memref<1x16xf32, #tpu.memory_space<vmem>>, %arg9: memref<1x1xf32, #tpu.memory_space<vmem>>, %arg10: memref<1x8xf32, #tpu.memory_space<vmem>>) attributes {dimension_semantics = [#tpu.dimension_semantics<parallel>], iteration_bounds = array<i64: 1>, scalar_prefetch = 0 : i64, scratch_operands = 0 : i64, tpu.core_type = #tpu.core_type<tc>, window_params = [{transform_indices = @transform_0, window_bounds = array<i64: 8, 12>}, {pipeline_mode = #tpu.pipeline_mode<synchronous>, transform_indices = @transform_1, window_bounds = array<i64: 32, 12>}, {pipeline_mode = #tpu.pipeline_mode<synchronous>, transform_indices = @transform_2, window_bounds = array<i64: 32, 1>}, {pipeline_mode = #tpu.pipeline_mode<synchronous>, transform_indices = @transform_3, window_bounds = array<i64: 32, 32>}, {pipeline_mode = #tpu.pipeline_mode<synchronous>, transform_indices = @transform_4, window_bounds = array<i64: 32, 1>}, {pipeline_mode = #tpu.pipeline_mode<synchronous>, transform_indices = @transform_5, window_bounds = array<i64: 16, 32>}, {pipeline_mode = #tpu.pipeline_mode<synchronous>, transform_indices = @transform_6, window_bounds = array<i64: 16, 1>}, {pipeline_mode = #tpu.pipeline_mode<synchronous>, transform_indices = @transform_7, window_bounds = array<i64: 1, 16>}, {pipeline_mode = #tpu.pipeline_mode<synchronous>, transform_indices = @transform_8, window_bounds = array<i64: 1, 1>}, {transform_indices = @transform_9, window_bounds = array<i64: 1, 8>}]} {
    %c0 = arith.constant 0 : index
    %c0_0 = arith.constant 0 : index
    %0 = vector.load %arg2[%c0, %c0_0] : memref<32x12xf32, #tpu.memory_space<vmem>>, vector<32x12xf32>
    %c0_1 = arith.constant 0 : index
    %c0_2 = arith.constant 0 : index
    %1 = vector.load %arg3[%c0_1, %c0_2] : memref<32x1xf32, #tpu.memory_space<vmem>>, vector<32x1xf32>
    %c0_3 = arith.constant 0 : index
    %c0_4 = arith.constant 0 : index
    %2 = vector.load %arg4[%c0_3, %c0_4] : memref<32x32xf32, #tpu.memory_space<vmem>>, vector<32x32xf32>
    %c0_5 = arith.constant 0 : index
    %c0_6 = arith.constant 0 : index
    %3 = vector.load %arg5[%c0_5, %c0_6] : memref<32x1xf32, #tpu.memory_space<vmem>>, vector<32x1xf32>
    %c0_7 = arith.constant 0 : index
    %c0_8 = arith.constant 0 : index
    %4 = vector.load %arg6[%c0_7, %c0_8] : memref<16x32xf32, #tpu.memory_space<vmem>>, vector<16x32xf32>
    %c0_9 = arith.constant 0 : index
    %c0_10 = arith.constant 0 : index
    %5 = vector.load %arg7[%c0_9, %c0_10] : memref<16x1xf32, #tpu.memory_space<vmem>>, vector<16x1xf32>
    %c0_11 = arith.constant 0 : index
    %c0_12 = arith.constant 0 : index
    %6 = vector.load %arg8[%c0_11, %c0_12] : memref<1x16xf32, #tpu.memory_space<vmem>>, vector<1x16xf32>
    %c0_13 = arith.constant 0 : index
    %c0_14 = arith.constant 0 : index
    %7 = vector.load %arg9[%c0_13, %c0_14] : memref<1x1xf32, #tpu.memory_space<vmem>>, vector<1x1xf32>
    %c0_15 = arith.constant 0 : index
    %c0_16 = arith.constant 0 : index
    %8 = vector.load %arg1[%c0_15, %c0_16] : memref<8x12xf32, #tpu.memory_space<vmem>>, vector<8x12xf32>
    %cst = arith.constant dense<0.000000e+00> : vector<32x8xf32>
    %9 = tpu.matmul %0, %8, %cst {dimension_numbers = #tpu.dot_dimension_numbers<[1], [1], [0], [0], [0, 0, 1, 0], [], []>} : vector<32x12xf32>, vector<8x12xf32>, vector<32x8xf32> -> vector<32x8xf32>
    %10 = vector.broadcast %1 : vector<32x1xf32> to vector<32x8xf32>
    %11 = arith.addf %9, %10 : vector<32x8xf32>
    %cst_17 = arith.constant 0.000000e+00 : f32
    %12 = vector.broadcast %cst_17 : f32 to vector<32x8xf32>
    %13 = arith.cmpf ogt, %11, %12 : vector<32x8xf32>
    %cst_18 = arith.constant 1.05070102 : f32
    %14 = vector.broadcast %cst_18 : f32 to vector<32x8xf32>
    %15 = arith.mulf %14, %11 : vector<32x8xf32>
    %16 = math.exp %11 : vector<32x8xf32>
    %cst_19 = arith.constant 1.75809932 : f32
    %17 = vector.broadcast %cst_19 : f32 to vector<32x8xf32>
    %18 = arith.mulf %17, %16 : vector<32x8xf32>
    %cst_20 = arith.constant 1.75809932 : f32
    %19 = vector.broadcast %cst_20 : f32 to vector<32x8xf32>
    %20 = arith.subf %18, %19 : vector<32x8xf32>
    %21 = arith.select %13, %15, %20 : vector<32x8xi1>, vector<32x8xf32>
    %cst_21 = arith.constant dense<0.000000e+00> : vector<32x8xf32>
    %22 = tpu.matmul %2, %21, %cst_21 {dimension_numbers = #tpu.dot_dimension_numbers<[1], [0], [0], [1], [0, 0, 1, 1], [], []>} : vector<32x32xf32>, vector<32x8xf32>, vector<32x8xf32> -> vector<32x8xf32>
    %23 = vector.broadcast %3 : vector<32x1xf32> to vector<32x8xf32>
    %24 = arith.addf %22, %23 : vector<32x8xf32>
    %cst_22 = arith.constant 0.000000e+00 : f32
    %25 = vector.broadcast %cst_22 : f32 to vector<32x8xf32>
    %26 = arith.cmpf ogt, %24, %25 : vector<32x8xf32>
    %cst_23 = arith.constant 1.05070102 : f32
    %27 = vector.broadcast %cst_23 : f32 to vector<32x8xf32>
    %28 = arith.mulf %27, %24 : vector<32x8xf32>
    %29 = math.exp %24 : vector<32x8xf32>
    %cst_24 = arith.constant 1.75809932 : f32
    %30 = vector.broadcast %cst_24 : f32 to vector<32x8xf32>
    %31 = arith.mulf %30, %29 : vector<32x8xf32>
    %cst_25 = arith.constant 1.75809932 : f32
    %32 = vector.broadcast %cst_25 : f32 to vector<32x8xf32>
    %33 = arith.subf %31, %32 : vector<32x8xf32>
    %34 = arith.select %26, %28, %33 : vector<32x8xi1>, vector<32x8xf32>
    %cst_26 = arith.constant dense<0.000000e+00> : vector<16x8xf32>
    %35 = tpu.matmul %4, %34, %cst_26 {dimension_numbers = #tpu.dot_dimension_numbers<[1], [0], [0], [1], [0, 0, 1, 1], [], []>} : vector<16x32xf32>, vector<32x8xf32>, vector<16x8xf32> -> vector<16x8xf32>
    %36 = vector.broadcast %5 : vector<16x1xf32> to vector<16x8xf32>
    %37 = arith.addf %35, %36 : vector<16x8xf32>
    %cst_27 = arith.constant 0.000000e+00 : f32
    %38 = vector.broadcast %cst_27 : f32 to vector<16x8xf32>
    %39 = arith.cmpf ogt, %37, %38 : vector<16x8xf32>
    %cst_28 = arith.constant 1.05070102 : f32
    %40 = vector.broadcast %cst_28 : f32 to vector<16x8xf32>
    %41 = arith.mulf %40, %37 : vector<16x8xf32>
    %42 = math.exp %37 : vector<16x8xf32>
    %cst_29 = arith.constant 1.75809932 : f32
    %43 = vector.broadcast %cst_29 : f32 to vector<16x8xf32>
    %44 = arith.mulf %43, %42 : vector<16x8xf32>
    %cst_30 = arith.constant 1.75809932 : f32
    %45 = vector.broadcast %cst_30 : f32 to vector<16x8xf32>
    %46 = arith.subf %44, %45 : vector<16x8xf32>
    %47 = arith.select %39, %41, %46 : vector<16x8xi1>, vector<16x8xf32>
    %cst_31 = arith.constant dense<0.000000e+00> : vector<1x8xf32>
    %48 = tpu.matmul %6, %47, %cst_31 {dimension_numbers = #tpu.dot_dimension_numbers<[1], [0], [0], [1], [0, 0, 1, 1], [], []>} : vector<1x16xf32>, vector<16x8xf32>, vector<1x8xf32> -> vector<1x8xf32>
    %49 = vector.broadcast %7 : vector<1x1xf32> to vector<1x8xf32>
    %50 = arith.addf %48, %49 : vector<1x8xf32>
    %c0_32 = arith.constant 0 : index
    %c0_33 = arith.constant 0 : index
    %51 = vector.load %arg10[%c0_32, %c0_33] : memref<1x8xf32, #tpu.memory_space<vmem>>, vector<1x8xf32>
    tpu.vector_store %arg10[%c0_32, %c0_33], %50 {strides = array<i32>} : memref<1x8xf32, #tpu.memory_space<vmem>>, vector<1x8xf32>,
    return
  }
  func.func @transform_0(%arg0: i32) -> (i32, i32) {
    %c0_i32 = arith.constant 0 : i32
    %c0_i32_0 = arith.constant 0 : i32
    return %arg0, %c0_i32 : i32, i32
  }
  func.func @transform_1(%arg0: i32) -> (i32, i32) {
    %c0_i32 = arith.constant 0 : i32
    %c0_i32_0 = arith.constant 0 : i32
    %c0_i32_1 = arith.constant 0 : i32
    return %c0_i32, %c0_i32_0 : i32, i32
  }
  func.func @transform_2(%arg0: i32) -> (i32, i32) {
    %c0_i32 = arith.constant 0 : i32
    %c0_i32_0 = arith.constant 0 : i32
    %c0_i32_1 = arith.constant 0 : i32
    return %c0_i32, %c0_i32_0 : i32, i32
  }
  func.func @transform_3(%arg0: i32) -> (i32, i32) {
    %c0_i32 = arith.constant 0 : i32
    %c0_i32_0 = arith.constant 0 : i32
    %c0_i32_1 = arith.constant 0 : i32
    return %c0_i32, %c0_i32_0 : i32, i32
  }
  func.func @transform_4(%arg0: i32) -> (i32, i32) {
    %c0_i32 = arith.constant 0 : i32
    %c0_i32_0 = arith.constant 0 : i32
    %c0_i32_1 = arith.constant 0 : i32
    return %c0_i32, %c0_i32_0 : i32, i32
  }
  func.func @transform_5(%arg0: i32) -> (i32, i32) {
    %c0_i32 = arith.constant 0 : i32
    %c0_i32_0 = arith.constant 0 : i32
    %c0_i32_1 = arith.constant 0 : i32
    return %c0_i32, %c0_i32_0 : i32, i32
  }
  func.func @transform_6(%arg0: i32) -> (i32, i32) {
    %c0_i32 = arith.constant 0 : i32
    %c0_i32_0 = arith.constant 0 : i32
    %c0_i32_1 = arith.constant 0 : i32
    return %c0_i32, %c0_i32_0 : i32, i32
  }
  func.func @transform_7(%arg0: i32) -> (i32, i32) {
    %c0_i32 = arith.constant 0 : i32
    %c0_i32_0 = arith.constant 0 : i32
    %c0_i32_1 = arith.constant 0 : i32
    return %c0_i32, %c0_i32_0 : i32, i32
  }
  func.func @transform_8(%arg0: i32) -> (i32, i32) {
    %c0_i32 = arith.constant 0 : i32
    %c0_i32_0 = arith.constant 0 : i32
    %c0_i32_1 = arith.constant 0 : i32
    return %c0_i32, %c0_i32_0 : i32, i32
  }
  func.func @transform_9(%arg0: i32) -> (i32, i32) {
    %c0_i32 = arith.constant 0 : i32
    %c0_i32_0 = arith.constant 0 : i32
    return %c0_i32, %arg0 : i32, i32
  }
}

</mosaic_0001>

<llo_original>
// kernel: tpu_custom_call.1
$region0: #{tpu_custom_call.1}
  #allocation0 [shape = 'u32[]', space=smem, size = 0x4, offset = 0x4, fixed_abs, tag = 'smem constant byte address 0x4 - core index']
  #allocation1 [shape = 'u32[72,128]{1,0:T(1,128)}', space=vmem, size = 0x9000, scoped, tag = 'internal scratch']
  #allocation2 [shape = 'f32[1,1]{1,0:T(1,128)S(1)}', space=vmem, size = 0x200, scoped, tag = 'scoped memory for tpu_custom_call.1']
  %s0 = inlined_call_operand.vmem [shape: f32[8,12], index: 0, kind: input, shape index: {}]
  %s1 = inlined_call_operand.vmem [shape: f32[32,12], index: 1, kind: input, shape index: {}]
  %s2 = inlined_call_operand.vmem [shape: f32[32,1], index: 2, kind: input, shape index: {}]
  %s3 = inlined_call_operand.vmem [shape: f32[32,32], index: 3, kind: input, shape index: {}]
  %s4 = inlined_call_operand.vmem [shape: f32[32,1], index: 4, kind: input, shape index: {}]
  %s5 = inlined_call_operand.vmem [shape: f32[16,32], index: 5, kind: input, shape index: {}]
  %s6 = inlined_call_operand.vmem [shape: f32[16,1], index: 6, kind: input, shape index: {}]
  %s7 = inlined_call_operand.vmem [shape: f32[1,16], index: 7, kind: input, shape index: {}]
  %s8 = inlined_call_operand.<no memory space> [shape: f32[1,1], index: 8, kind: input, shape index: {}]
  %s9 = inlined_call_operand.hbm [shape: f32[1,8], index: 9, kind: output, shape index: {}]
  %s10 = sld [smem:[#allocation0]]
  $region46: #{tpu_custom_call.1} parent=0
    _
  %s12 = ssub.s32 1, %s10
  %s13 = scalar_select 0, %s12, %s10
  %v14 = vstv %s8
  %15 = vst [vmem:[#allocation2] sm:$0x1] %v14
  $region1: #{tpu_custom_call.1} parent=0
    #allocation3 [shape = 'u8[512]{0}', space=vmem, size = 0x400, scoped, tag = 'output window, operand 0, single buffered']
    #allocation4 [shape = 's32[1]{0}', space=sflag, size = 0x4, scoped, tag = 'scoped memory for tpu_custom_call.1']
    %16 = vsyncpa [#allocation4], 0
    // Predicated region
    $region2: #{tpu_custom_call.1} parent=1 // pred_check
      _
    $region3: #{tpu_custom_call.1} parent=1 // pred_check_branch
      %18 = sbr.rel (0) target = $region5
    $region4: #{tpu_custom_call.1} parent=1 // pred_region
      _
    $region5: #{tpu_custom_call.1} parent=1 // pred_fallthru
      _
    // Predicated region
    $region6: #{tpu_custom_call.1} parent=1 // pred_check
      _
    $region7: #{tpu_custom_call.1} parent=1 // pred_check_branch
      %20 = sbr.rel (0) target = $region9
    $region8: #{tpu_custom_call.1} parent=1 // pred_region
      _
    $region9: #{tpu_custom_call.1} parent=1 // pred_fallthru
      _
    // Predicated region
    $region10: #{tpu_custom_call.1} parent=1 // pred_check
      _
    $region11: #{tpu_custom_call.1} parent=1 // pred_check_branch
      %22 = sbr.rel (0) target = $region13
    $region12: #{tpu_custom_call.1} parent=1 // pred_region
      _
    $region13: #{tpu_custom_call.1} parent=1 // pred_fallthru
      _
    // Predicated region
    $region14: #{tpu_custom_call.1} parent=1 // pred_check
      _
    $region15: #{tpu_custom_call.1} parent=1 // pred_check_branch
      %24 = sbr.rel (0) target = $region17
    $region16: #{tpu_custom_call.1} parent=1 // pred_region
      _
    $region17: #{tpu_custom_call.1} parent=1 // pred_fallthru
      _
    // Predicated region
    $region18: #{tpu_custom_call.1} parent=1 // pred_check
      _
    $region19: #{tpu_custom_call.1} parent=1 // pred_check_branch
      %26 = sbr.rel (0) target = $region21
    $region20: #{tpu_custom_call.1} parent=1 // pred_region
      _
    $region21: #{tpu_custom_call.1} parent=1 // pred_fallthru
      _
    // Predicated region
    $region22: #{tpu_custom_call.1} parent=1 // pred_check
      _
    $region23: #{tpu_custom_call.1} parent=1 // pred_check_branch
      %28 = sbr.rel (0) target = $region25
    $region24: #{tpu_custom_call.1} parent=1 // pred_region
      _
    $region25: #{tpu_custom_call.1} parent=1 // pred_fallthru
      _
    // Predicated region
    $region26: #{tpu_custom_call.1} parent=1 // pred_check
      _
    $region27: #{tpu_custom_call.1} parent=1 // pred_check_branch
      %30 = sbr.rel (0) target = $region29
    $region28: #{tpu_custom_call.1} parent=1 // pred_region
      _
    $region29: #{tpu_custom_call.1} parent=1 // pred_fallthru
      _
    // Predicated region
    $region30: #{tpu_custom_call.1} parent=1 // pred_check
      _
    $region31: #{tpu_custom_call.1} parent=1 // pred_check_branch
      %32 = sbr.rel (0) target = $region33
    $region32: #{tpu_custom_call.1} parent=1 // pred_region
      _
    $region33: #{tpu_custom_call.1} parent=1 // pred_fallthru
      _
    // Predicated region
    $region34: #{tpu_custom_call.1} parent=1 // pred_check
      _
    $region35: #{tpu_custom_call.1} parent=1 // pred_check_branch
      %34 = sbr.rel (0) target = $region37
    $region36: #{tpu_custom_call.1} parent=1 // pred_region
      _
    $region37: #{tpu_custom_call.1} parent=1 // pred_fallthru
      _
    %v35 = vld [vmem:[%s1] sm:$0xff]
    %v36 = vld [vmem:[%s1 + $0x8] sm:$0xff]
    %v37 = vld [vmem:[%s1 + $0x10] sm:$0xff]
    %v38 = vld [vmem:[%s1 + $0x18] sm:$0xff]
    %v39 = vld [vmem:[%s2] sm:$0xff]
    %v40 = vld [vmem:[%s2 + $0x8] sm:$0xff]
    %v41 = vld [vmem:[%s2 + $0x10] sm:$0xff]
    %v42 = vld [vmem:[%s2 + $0x18] sm:$0xff]
    %v43 = vld [vmem:[%s3] sm:$0xff]
    %v44 = vld [vmem:[%s3 + $0x8] sm:$0xff]
    %v45 = vld [vmem:[%s3 + $0x10] sm:$0xff]
    %v46 = vld [vmem:[%s3 + $0x18] sm:$0xff]
    %v47 = vld [vmem:[%s4] sm:$0xff]
    %v48 = vld [vmem:[%s4 + $0x8] sm:$0xff]
    %v49 = vld [vmem:[%s4 + $0x10] sm:$0xff]
    %v50 = vld [vmem:[%s4 + $0x18] sm:$0xff]
    %v51 = vld [vmem:[%s5] sm:$0xff]
    %v52 = vld [vmem:[%s5 + $0x8] sm:$0xff]
    %v53 = vld [vmem:[%s6] sm:$0xff]
    %v54 = vld [vmem:[%s6 + $0x8] sm:$0xff]
    %v55 = vld [vmem:[%s7] sm:$0x1]
    %v56 = vld [vmem:[#allocation2] sm:$0x1]
    %v57 = vld [vmem:[%s0] sm:$0xff]
    %59 = vset.pattern.permute.xlu0 0
    %60 = vperm.xlu0 %59, %v39
    %v61 = vpop.permute.xlu0 %60
    %64 = vset.pattern.permute.xlu0 0
    %65 = vperm.xlu0 %64, %v40
    %v66 = vpop.permute.xlu0 %65
    %69 = vset.pattern.permute.xlu0 0
    %70 = vperm.xlu0 %69, %v41
    %v71 = vpop.permute.xlu0 %70
    %74 = vset.pattern.permute.xlu0 0
    %75 = vperm.xlu0 %74, %v42
    %v76 = vpop.permute.xlu0 %75
    %vm78 = vcmask 97280
    %v80 = vsel %vm78, %v35, 0
    %v83 = vsel %vm78, %v36, 0
    %v86 = vsel %vm78, %v37, 0
    %v89 = vsel %vm78, %v38, 0
    %v92 = vsel %vm78, %v57, 0
    %94 = vmatpush.xpose.msra.mxu0 0.0
    %95 = vmatpush.xpose.msra.mxu0 0.0
    %96 = vmatpush.xpose.msra.mxu0 0.0
    %97 = vmatpush.xpose.msra.mxu0 0.0
    %98 = vmatpush.xpose.msra.mxu0 0.0
    %99 = vmatpush.xpose.msra.mxu0 0.0
    %100 = vmatpush.xpose.msra.mxu0 0.0
    %101 = vmatpush.xpose.msra.mxu0 0.0
    %102 = vmatpush.xpose.msra.mxu0 0.0
    %103 = vmatpush.xpose.msra.mxu0 0.0
    %104 = vmatpush.xpose.msra.mxu0 0.0
    %105 = vmatpush.xpose.msra.mxu0 0.0
    %106 = vmatpush.xpose.msra.mxu0 0.0
    %107 = vmatpush.xpose.msra.mxu0 0.0
    %108 = vmatpush.xpose.msra.mxu0 0.0
    %109 = vmatpush.xpose.msra.mxu0 %v92
    %110 = vmatmul.f32.gmra.mxu0 %v80
    %v111 = vpop.f32.mrf.mxu0
    %v112 = vadd.f32 %v61, %v111
    %113 = vmatmul.f32.gmra.mxu0 %v83
    %v114 = vpop.f32.mrf.mxu0
    %v115 = vadd.f32 %v66, %v114
    %116 = vmatmul.f32.gmra.mxu0 %v86
    %v117 = vpop.f32.mrf.mxu0
    %v118 = vadd.f32 %v71, %v117
    %119 = vmatmul.f32.gmra.mxu0 %v89
    %v120 = vpop.f32.mrf.mxu0
    %v121 = vadd.f32 %v76, %v120
    %122 = vdwg.mxu0
    %vm123 = vcmp.gt.f32.partialorder %v112, 0.0
    %vm124 = vcmp.gt.f32.partialorder %v115, 0.0
    %vm125 = vcmp.gt.f32.partialorder %v118, 0.0
    %vm126 = vcmp.gt.f32.partialorder %v121, 0.0
    %v127 = vmul.f32 %v112, 1.050701
    %v128 = vmul.f32 %v115, 1.050701
    %v129 = vmul.f32 %v118, 1.050701
    %v130 = vmul.f32 %v121, 1.050701
    %v131 = vmul.f32 %v112, 1.442695
    %v132 = vpow.pop %v131
    %v133 = vmul.f32 %v115, 1.442695
    %v134 = vpow.pop %v133
    %v135 = vmul.f32 %v118, 1.442695
    %v136 = vpow.pop %v135
    %v137 = vmul.f32 %v121, 1.442695
    %v138 = vpow.pop %v137
    %v139 = vmul.f32 %v132, 1.7580993
    %v140 = vmul.f32 %v134, 1.7580993
    %v141 = vmul.f32 %v136, 1.7580993
    %v142 = vmul.f32 %v138, 1.7580993
    %v143 = vsub.f32 %v139, 1.7580993
    %v144 = vsub.f32 %v140, 1.7580993
    %v145 = vsub.f32 %v141, 1.7580993
    %v146 = vsub.f32 %v142, 1.7580993
    %v147 = vsel %vm123, %v127, %v143
    %v148 = vsel %vm124, %v128, %v144
    %v149 = vsel %vm125, %v129, %v145
    %v150 = vsel %vm126, %v130, %v146
    %152 = vset.pattern.permute.xlu0 0
    %153 = vperm.xlu0 %152, %v47
    %v154 = vpop.permute.xlu0 %153
    %157 = vset.pattern.permute.xlu0 0
    %158 = vperm.xlu0 %157, %v48
    %v159 = vpop.permute.xlu0 %158
    %162 = vset.pattern.permute.xlu0 0
    %163 = vperm.xlu0 %162, %v49
    %v164 = vpop.permute.xlu0 %163
    %167 = vset.pattern.permute.xlu0 0
    %168 = vperm.xlu0 %167, %v50
    %v169 = vpop.permute.xlu0 %168
    %vm171 = vcmask 261120
    %v173 = vsel %vm171, %v43, 0
    %v176 = vsel %vm171, %v44, 0
    %v179 = vsel %vm171, %v45, 0
    %v182 = vsel %vm171, %v46, 0
    %184 = vmatpush.msra.mxu0 0.0
    %185 = vmatpush.msra.mxu0 0.0
    %186 = vmatpush.msra.mxu0 0.0
    %187 = vmatpush.msra.mxu0 0.0
    %188 = vmatpush.msra.mxu0 0.0
    %189 = vmatpush.msra.mxu0 0.0
    %190 = vmatpush.msra.mxu0 0.0
    %191 = vmatpush.msra.mxu0 0.0
    %192 = vmatpush.msra.mxu0 0.0
    %193 = vmatpush.msra.mxu0 0.0
    %194 = vmatpush.msra.mxu0 0.0
    %195 = vmatpush.msra.mxu0 0.0
    %196 = vmatpush.msra.mxu0 %v150
    %197 = vmatpush.msra.mxu0 %v149
    %198 = vmatpush.msra.mxu0 %v148
    %199 = vmatpush.msra.mxu0 %v147
    %200 = vmatmul.f32.gmra.mxu0 %v173
    %v201 = vpop.f32.mrf.mxu0
    %v202 = vadd.f32 %v154, %v201
    %203 = vmatmul.f32.gmra.mxu0 %v176
    %v204 = vpop.f32.mrf.mxu0
    %v205 = vadd.f32 %v159, %v204
    %206 = vmatmul.f32.gmra.mxu0 %v179
    %v207 = vpop.f32.mrf.mxu0
    %v208 = vadd.f32 %v164, %v207
    %209 = vmatmul.f32.gmra.mxu0 %v182
    %v210 = vpop.f32.mrf.mxu0
    %v211 = vadd.f32 %v169, %v210
    %212 = vdwg.mxu0
    %vm213 = vcmp.gt.f32.partialorder %v202, 0.0
    %vm214 = vcmp.gt.f32.partialorder %v205, 0.0
    %vm215 = vcmp.gt.f32.partialorder %v208, 0.0
    %vm216 = vcmp.gt.f32.partialorder %v211, 0.0
    %v217 = vmul.f32 %v202, 1.050701
    %v218 = vmul.f32 %v205, 1.050701
    %v219 = vmul.f32 %v208, 1.050701
    %v220 = vmul.f32 %v211, 1.050701
    %v221 = vmul.f32 %v202, 1.442695
    %v222 = vpow.pop %v221
    %v223 = vmul.f32 %v205, 1.442695
    %v224 = vpow.pop %v223
    %v225 = vmul.f32 %v208, 1.442695
    %v226 = vpow.pop %v225
    %v227 = vmul.f32 %v211, 1.442695
    %v228 = vpow.pop %v227
    %v229 = vmul.f32 %v222, 1.7580993
    %v230 = vmul.f32 %v224, 1.7580993
    %v231 = vmul.f32 %v226, 1.7580993
    %v232 = vmul.f32 %v228, 1.7580993
    %v233 = vsub.f32 %v229, 1.7580993
    %v234 = vsub.f32 %v230, 1.7580993
    %v235 = vsub.f32 %v231, 1.7580993
    %v236 = vsub.f32 %v232, 1.7580993
    %v237 = vsel %vm213, %v217, %v233
    %v238 = vsel %vm214, %v218, %v234
    %v239 = vsel %vm215, %v219, %v235
    %v240 = vsel %vm216, %v220, %v236
    %242 = vset.pattern.permute.xlu0 0
    %243 = vperm.xlu0 %242, %v53
    %v244 = vpop.permute.xlu0 %243
    %247 = vset.pattern.permute.xlu0 0
    %248 = vperm.xlu0 %247, %v54
    %v249 = vpop.permute.xlu0 %248
    %v252 = vsel %vm171, %v51, 0
    %v255 = vsel %vm171, %v52, 0
    %257 = vmatpush.msra.mxu0 0.0
    %258 = vmatpush.msra.mxu0 0.0
    %259 = vmatpush.msra.mxu0 0.0
    %260 = vmatpush.msra.mxu0 0.0
    %261 = vmatpush.msra.mxu0 0.0
    %262 = vmatpush.msra.mxu0 0.0
    %263 = vmatpush.msra.mxu0 0.0
    %264 = vmatpush.msra.mxu0 0.0
    %265 = vmatpush.msra.mxu0 0.0
    %266 = vmatpush.msra.mxu0 0.0
    %267 = vmatpush.msra.mxu0 0.0
    %268 = vmatpush.msra.mxu0 0.0
    %269 = vmatpush.msra.mxu0 %v240
    %270 = vmatpush.msra.mxu0 %v239
    %271 = vmatpush.msra.mxu0 %v238
    %272 = vmatpush.msra.mxu0 %v237
    %273 = vmatmul.f32.gmra.mxu0 %v252
    %v274 = vpop.f32.mrf.mxu0
    %v275 = vadd.f32 %v244, %v274
    %276 = vmatmul.f32.gmra.mxu0 %v255
    %v277 = vpop.f32.mrf.mxu0
    %v278 = vadd.f32 %v249, %v277
    %279 = vdwg.mxu0
    %vm280 = vcmp.gt.f32.partialorder %v275, 0.0
    %vm281 = vcmp.gt.f32.partialorder %v278, 0.0
    %v282 = vmul.f32 %v275, 1.050701
    %v283 = vmul.f32 %v278, 1.050701
    %v284 = vmul.f32 %v275, 1.442695
    %v285 = vpow.pop %v284
    %v286 = vmul.f32 %v278, 1.442695
    %v287 = vpow.pop %v286
    %v288 = vmul.f32 %v285, 1.7580993
    %v289 = vmul.f32 %v287, 1.7580993
    %v290 = vsub.f32 %v288, 1.7580993
    %v291 = vsub.f32 %v289, 1.7580993
    %v292 = vsel %vm280, %v282, %v290
    %v293 = vsel %vm281, %v283, %v291
    %295 = vset.pattern.permute.xlu0 0
    %296 = vperm.xlu0 %295, %v56
    %v297 = vpop.permute.xlu0 %296
    %v299 = vperm.slane %v297, 0
    %vm300 = vcmask 130048
    %v302 = vsel %vm300, %v55, 0
    %304 = vmatpush.msra.mxu0 0.0
    %305 = vmatpush.msra.mxu0 0.0
    %306 = vmatpush.msra.mxu0 0.0
    %307 = vmatpush.msra.mxu0 0.0
    %308 = vmatpush.msra.mxu0 0.0
    %309 = vmatpush.msra.mxu0 0.0
    %310 = vmatpush.msra.mxu0 0.0
    %311 = vmatpush.msra.mxu0 0.0
    %312 = vmatpush.msra.mxu0 0.0
    %313 = vmatpush.msra.mxu0 0.0
    %314 = vmatpush.msra.mxu0 0.0
    %315 = vmatpush.msra.mxu0 0.0
    %316 = vmatpush.msra.mxu0 0.0
    %317 = vmatpush.msra.mxu0 0.0
    %318 = vmatpush.msra.mxu0 %v293
    %319 = vmatpush.msra.mxu0 %v292
    %320 = vmatmul.f32.gmra.mxu0 %v302
    %v321 = vpop.f32.mrf.mxu0
    %v322 = vadd.f32 %v299, %v321
    %323 = vdwg.mxu0
    %vm324 = vcmask 57344
    %325 = vst.msk [vmem:[#allocation3] sm:$0x1] %vm324, %v322
    // Predicated region
    $region38: #{tpu_custom_call.1} parent=1 // pred_check
      _
    $region39: #{tpu_custom_call.1} parent=1 // pred_check_branch
      %327 = sbr.rel (0) target = $region41
    $region40: #{tpu_custom_call.1} parent=1 // pred_region
      %329 = vsyncadd [#allocation4], 0
      %s331 = sshll.u32 [#allocation3], 4
      %s332 = int_to_ptr.vmem [resolvable:$true] %s331
      %s333 = sshll.u32 %s9, 4
      %s334 = int_to_ptr.hbm [resolvable:$true] %s333
      %336 = dma.vmem_to_hbm [thread:$0]  %s332, 16, %s334, [#allocation4]
    $region41: #{tpu_custom_call.1} parent=1 // pred_fallthru
      _
    // Predicated region
    $region42: #{tpu_custom_call.1} parent=1 // pred_check
      _
    $region43: #{tpu_custom_call.1} parent=1 // pred_check_branch
      %338 = sbr.rel (0) target = $region45
    $region44: #{tpu_custom_call.1} parent=1 // pred_region
      %340 = dma.done [#allocation4], 16
    $region45: #{tpu_custom_call.1} parent=1 // pred_fallthru
      _
    %341 = vsyncpa [#allocation4], 1

</llo_original>
